<compile_context>
chip_gen: v6e
topology: v6e:2x2x1
jax: 0.10.0
libtpu: 0.0.40
codegen_flags: <defaults>
</compile_context>

<pallas_src>
import functools

import jax
import jax.numpy as jnp
from jax.experimental import pallas as pl
from jax.experimental.pallas import tpu as pltpu

_LANES = 128


def _round_up(a, b):
    return (a + b - 1) // b * b


def _im2col(x, k, s, p, m_pad):
    """x: (N, C, H, W) bf16 -> patches (m_pad, C*k*k) bf16.
    Flattening order (C, kh, kw) matches torch weight.reshape(OC, C*k*k).
    Rows >= N*OH*OW (if any) are zero."""
    n, c, h, w = x.shape
    oh = (h + 2 * p - k) // s + 1
    ow = (w + 2 * p - k) // s + 1
    xp = jnp.pad(x, ((0, 0), (0, 0), (p, p), (p, p)))
    cols = []
    for i in range(k):
        for j in range(k):
            cols.append(xp[:, :, i:i + s * oh:s, j:j + s * ow:s])   # (N,C,OH,OW)
    pat = jnp.stack(cols, axis=2)                 # (N, C, k*k, OH, OW)
    pat = pat.reshape(n, c * k * k, oh, ow)
    pat = jnp.transpose(pat, (0, 2, 3, 1))        # (N, OH, OW, C*k*k)
    pat = pat.reshape(n * oh * ow, c * k * k)
    m = n * oh * ow
    if m_pad != m:                                # usually a no-op (tiling keeps m_pad == m)
        pat = jnp.pad(pat, ((0, m_pad - m), (0, 0)))
    return pat


def _fused_bn_kernel(p_ref, w_ref, gamma_ref, beta_ref, o_ref,
                     stats_ref, scale_ref, shift_ref,
                     *, apply_relu, inv_m, eps, oc):
    """grid = (phase, tile). Phase 0: accumulate BN stats. Phase 1: affine+ReLU."""
    phase = pl.program_id(0)
    tile = pl.program_id(1)

    # Shared MXU work: bf16 inputs, f32 accumulation -> (tm, OCp).
    y = jnp.dot(p_ref[...], w_ref[...], preferred_element_type=jnp.float32)

    @pl.when((phase == 0) & (tile == 0))
    def _init():
        stats_ref[...] = jnp.zeros_like(stats_ref)

    @pl.when(phase == 0)
    def _stats():
        s1 = jnp.sum(y, axis=0, keepdims=True)        # (1, OCp)
        s2 = jnp.sum(y * y, axis=0, keepdims=True)    # (1, OCp)
        stats_ref[...] += jnp.concatenate([s1, s2], axis=0)

    @pl.when((phase == 1) & (tile == 0))
    def _finalize():
        st = stats_ref[...]
        mean = st[0:1, :] * inv_m
        var = jnp.maximum(st[1:2, :] * inv_m - mean * mean, 0.0)   # biased var
        inv = jax.lax.rsqrt(var + eps)
        scale = gamma_ref[...] * inv
        scale_ref[...] = scale
        shift_ref[...] = beta_ref[...] - mean * scale

    @pl.when(phase == 1)
    def _emit():
        z = y * scale_ref[...] + shift_ref[...]
        if apply_relu:
            z = jnp.maximum(z, 0.0)
        # Store only the real OC channels (not the 128-lane MXU padding).
        o_ref[...] = z[:, :oc].astype(o_ref.dtype)


def _affine_kernel(p_ref, w_ref, scale_ref, shift_ref, o_ref, *, apply_relu, oc):
    """conv + per-channel affine (bias) + optional ReLU (no batch-norm path)."""
    y = jnp.dot(p_ref[...], w_ref[...], preferred_element_type=jnp.float32)
    y = y * scale_ref[...] + shift_ref[...]
    if apply_relu:
        y = jnp.maximum(y, 0.0)
    o_ref[...] = y[:, :oc].astype(o_ref.dtype)


def conv2d_bn_relu(x, weight, bias, gamma, beta, *, k, s, p,
                   activation=True, batch_norm=True, eps=1e-5,
                   block_m=4096, out_dtype=jnp.bfloat16, channels_last=False):
    """x: (N, C, H, W) f32. weight: (OC, C, k, k).
    Returns (N, OC, OH, OW) (or NHWC if channels_last=True) in out_dtype."""
    n, c, h, w = x.shape
    oc = weight.shape[0]
    oh = (h + 2 * p - k) // s + 1
    ow = (w + 2 * p - k) // s + 1
    m = n * oh * ow
    kdim = c * k * k
    ocp = _round_up(oc, _LANES)                      # lane-dense MXU operand width

    # M tiling: as large as block_m allows; force >=2 tiles when M permits so
    # the (parallel) no-BN path can use both v7x TensorCores. Chosen so that
    # m_pad == m whenever m is a multiple of 16 (avoids the extra pad copy).
    n_tiles = max(1, pl.cdiv(m, block_m))
    if n_tiles == 1 and m >= 256:
        n_tiles = 2
    tm = _round_up(pl.cdiv(m, n_tiles), 16)
    m_pad = n_tiles * tm

    # bf16 patches (halved im2col HBM bytes); matmul accumulates in f32.
    patches = _im2col(x.astype(jnp.bfloat16), k, s, p, m_pad)        # (m_pad, K)
    w2d = weight.astype(jnp.bfloat16).reshape(oc, kdim).T            # (K, OC)
    w2d = jnp.pad(w2d, ((0, 0), (0, ocp - oc)))                      # (K, OCp)

    # VMEM budget with physical lane padding (kdim/oc -> 128 lanes) and sublane
    # rounding, plus the f32 matmul temporary.
    osz = jnp.dtype(out_dtype).itemsize
    tm_s = _round_up(tm, 16)
    patch_buf = tm_s * _LANES * 2
    out_buf = tm_s * _LANES * osz
    w_buf = _round_up(kdim, 16) * _LANES * 2
    y_tmp = tm_s * _LANES * 4
    vmem_need = 2 * patch_buf + 2 * out_buf + w_buf + 2 * y_tmp + 8 * _LANES * 4
    vmem_limit = int(min(max(2 * vmem_need, 16 << 20), 32 << 20))

    mm_flops = 2 * m_pad * kdim * ocp

    if batch_norm:
        # Conv bias cancels under batch-norm -> dropped (dead compute + DMA).
        gamma_p = jnp.pad(gamma.astype(jnp.float32), (0, ocp - oc)).reshape(1, ocp)
        beta_p = jnp.pad(beta.astype(jnp.float32), (0, ocp - oc)).reshape(1, ocp)

        # Output index map (i*ph, 0): during phase 0 it stays on block 0, so no
        # block is flushed until phase 1 writes real data, and every output
        # block is written exactly once.
        out_p = pl.pallas_call(
            functools.partial(_fused_bn_kernel, apply_relu=activation,
                              inv_m=1.0 / m, eps=eps, oc=oc),
            out_shape=jax.ShapeDtypeStruct((m_pad, oc), out_dtype),
            grid_spec=pltpu.PrefetchScalarGridSpec(
                num_scalar_prefetch=0, grid=(2, n_tiles),
                in_specs=[pl.BlockSpec((tm, kdim), lambda ph, i: (i, 0)),
                          pl.BlockSpec((kdim, ocp), lambda ph, i: (0, 0)),
                          pl.BlockSpec((1, ocp), lambda ph, i: (0, 0)),
                          pl.BlockSpec((1, ocp), lambda ph, i: (0, 0))],
                out_specs=pl.BlockSpec((tm, oc), lambda ph, i: (i * ph, 0)),
                scratch_shapes=[pltpu.VMEM((2, ocp), jnp.float32),   # sum / sumsq
                                pltpu.VMEM((1, ocp), jnp.float32),   # scale
                                pltpu.VMEM((1, ocp), jnp.float32)]), # shift
            compiler_params=pltpu.CompilerParams(
                # Stats accumulate sequentially across tiles -> arbitrary.
                dimension_semantics=("arbitrary", "arbitrary"),
                vmem_limit_bytes=vmem_limit),
            cost_estimate=pl.CostEstimate(
                flops=int(2 * mm_flops + 8 * m_pad * ocp),
                transcendentals=int(ocp),
                bytes_accessed=int(2 * m_pad * kdim * 2 + kdim * ocp * 2
                                   + 2 * ocp * 4 + m_pad * oc * osz)),
        )(patches, w2d, gamma_p, beta_p)
    else:
        scale = jnp.ones((1, ocp), jnp.float32)
        shift = jnp.pad(bias.astype(jnp.float32), (0, ocp - oc)).reshape(1, ocp)
        out_p = pl.pallas_call(
            functools.partial(_affine_kernel, apply_relu=activation, oc=oc),
            out_shape=jax.ShapeDtypeStruct((m_pad, oc), out_dtype),
            grid_spec=pltpu.PrefetchScalarGridSpec(
                num_scalar_prefetch=0, grid=(n_tiles,),
                in_specs=[pl.BlockSpec((tm, kdim), lambda i: (i, 0)),
                          pl.BlockSpec((kdim, ocp), lambda i: (0, 0)),
                          pl.BlockSpec((1, ocp), lambda i: (0, 0)),
                          pl.BlockSpec((1, ocp), lambda i: (0, 0))],
                out_specs=pl.BlockSpec((tm, oc), lambda i: (i, 0))),
            compiler_params=pltpu.CompilerParams(
                dimension_semantics=("parallel",),
                vmem_limit_bytes=vmem_limit),
            cost_estimate=pl.CostEstimate(
                flops=int(mm_flops + 3 * m_pad * ocp),
                transcendentals=0,
                bytes_accessed=int(m_pad * kdim * 2 + kdim * ocp * 2
                                   + 2 * ocp * 4 + m_pad * oc * osz)),
        )(patches, w2d, scale, shift)

    out = out_p if m_pad == m else out_p[:m]
    out = out.reshape(n, oh, ow, oc)               # NHWC: free (contiguous) reshape
    if channels_last:
        return out
    # TODO(synk): keep activations NHWC across layers to skip this transpose.
    return jnp.transpose(out, (0, 3, 1, 2))        # NCHW, per the module's contract


def _reference(x, weight, bias, gamma, beta, *, k, s, p, activation, batch_norm,
               eps=1e-5):
    # Pure-JAX reference (same bf16 matmul inputs, f32 accumulation).
    y = jax.lax.conv_general_dilated(
        x.astype(jnp.bfloat16), weight.astype(jnp.bfloat16),
        window_strides=(s, s), padding=[(p, p), (p, p)],
        dimension_numbers=("NCHW", "OIHW", "NCHW"),
        preferred_element_type=jnp.float32)
    y = y + bias.reshape(1, -1, 1, 1)
    if batch_norm:
        mean = jnp.mean(y, axis=(0, 2, 3), keepdims=True)
        var = jnp.mean((y - mean) ** 2, axis=(0, 2, 3), keepdims=True)
        y = ((y - mean) * jax.lax.rsqrt(var + eps) * gamma.reshape(1, -1, 1, 1)
             + beta.reshape(1, -1, 1, 1))
    if activation:
        y = jnp.maximum(y, 0.0)
    return y


if __name__ == "__main__":
    # Module config: Conv2d(in_channels=4, out_channels=8, k=3, s=1, p=1)
    N, C, H, W = 2, 4, 16, 16
    OC, K, S, P = 8, 3, 1, 1

    key = jax.random.PRNGKey(0)
    kx, kw, kb, kg, kbt = jax.random.split(key, 5)

    x = jax.random.normal(kx, (N, C, H, W), dtype=jnp.float32)
    fan_in = C * K * K
    bound = 1.0 / (fan_in ** 0.5)
    weight = jax.random.uniform(kw, (OC, C, K, K), jnp.float32, -bound, bound)
    bias = jax.random.uniform(kb, (OC,), jnp.float32, -bound, bound)
    gamma = 1.0 + 0.1 * jax.random.normal(kg, (OC,), jnp.float32)
    beta = 0.1 * jax.random.normal(kbt, (OC,), jnp.float32)

    # 1) Default tiling (2 M tiles), fused BN+ReLU, NCHW output (module contract).
    out_bn = conv2d_bn_relu(x, weight, bias, gamma, beta, k=K, s=S, p=P,
                            activation=True, batch_norm=True)
    out_bn = jax.block_until_ready(out_bn)
    assert out_bn.shape == (N, OC, H, W), out_bn.shape
    ref_bn = _reference(x, weight, bias, gamma, beta, k=K, s=S, p=P,
                        activation=True, batch_norm=True)
    err = float(jnp.max(jnp.abs(out_bn.astype(jnp.float32) - ref_bn)))
    assert jnp.allclose(out_bn.astype(jnp.float32), ref_bn, atol=3e-2, rtol=3e-2), err

    # 2) Multi-tile fused BN path (block_m=128 -> 4 tiles), NHWC output.
    out_bn4 = conv2d_bn_relu(x, weight, bias, gamma, beta, k=K, s=S, p=P,
                             activation=True, batch_norm=True, block_m=128,
                             channels_last=True)
    out_bn4 = jax.block_until_ready(out_bn4)
    assert out_bn4.shape == (N, H, W, OC), out_bn4.shape
    ref_bn_nhwc = jnp.transpose(ref_bn, (0, 2, 3, 1))
    err2 = float(jnp.max(jnp.abs(out_bn4.astype(jnp.float32) - ref_bn_nhwc)))
    assert jnp.allclose(out_bn4.astype(jnp.float32), ref_bn_nhwc,
                        atol=3e-2, rtol=3e-2), err2

    # 3) conv + bias + ReLU (no batch-norm) path, multi-tile, NHWC.
    out_nb = conv2d_bn_relu(x, weight, bias, gamma, beta, k=K, s=S, p=P,
                            activation=True, batch_norm=False, block_m=128,
                            channels_last=True)
    out_nb = jax.block_until_ready(out_nb)
    ref_nb = jnp.transpose(
        _reference(x, weight, bias, gamma, beta, k=K, s=S, p=P,
                   activation=True, batch_norm=False), (0, 2, 3, 1))
    err3 = float(jnp.max(jnp.abs(out_nb.astype(jnp.float32) - ref_nb)))
    assert jnp.allclose(out_nb.astype(jnp.float32), ref_nb,
                        atol=3e-2, rtol=3e-2), err3

    print("KERNEL_OK")
</pallas_src>

<mosaic_0001>
module attributes {stable_mosaic.version = 11 : i64} {
  func.func @_fused_bn_kernel(%arg0: i32, %arg1: i32, %arg2: memref<256x36xbf16, #tpu.memory_space<vmem>>, %arg3: memref<36x128xbf16, #tpu.memory_space<vmem>>, %arg4: memref<1x128xf32, #tpu.memory_space<vmem>>, %arg5: memref<1x128xf32, #tpu.memory_space<vmem>>, %arg6: memref<256x8xbf16, #tpu.memory_space<vmem>>, %arg7: memref<2x128xf32, #tpu.memory_space<vmem>>, %arg8: memref<1x128xf32, #tpu.memory_space<vmem>>, %arg9: memref<1x128xf32, #tpu.memory_space<vmem>>) attributes {dimension_semantics = [#tpu.dimension_semantics<arbitrary>, #tpu.dimension_semantics<arbitrary>], iteration_bounds = array<i64: 2, 2>, scalar_prefetch = 0 : i64, scratch_operands = 3 : i64, tpu.core_type = #tpu.core_type<tc>, window_params = [{transform_indices = @transform_0, window_bounds = array<i64: 256, 36>}, {pipeline_mode = #tpu.pipeline_mode<synchronous>, transform_indices = @transform_1, window_bounds = array<i64: 36, 128>}, {pipeline_mode = #tpu.pipeline_mode<synchronous>, transform_indices = @transform_2, window_bounds = array<i64: 1, 128>}, {pipeline_mode = #tpu.pipeline_mode<synchronous>, transform_indices = @transform_3, window_bounds = array<i64: 1, 128>}, {transform_indices = @transform_4, window_bounds = array<i64: 256, 8>}]} {
    %c0 = arith.constant 0 : index
    %c0_0 = arith.constant 0 : index
    %0 = vector.load %arg2[%c0, %c0_0] : memref<256x36xbf16, #tpu.memory_space<vmem>>, vector<256x36xbf16>
    %c0_1 = arith.constant 0 : index
    %c0_2 = arith.constant 0 : index
    %1 = vector.load %arg3[%c0_1, %c0_2] : memref<36x128xbf16, #tpu.memory_space<vmem>>, vector<36x128xbf16>
    %cst = arith.constant dense<0.000000e+00> : vector<256x128xf32>
    %2 = tpu.matmul %0, %1, %cst {dimension_numbers = #tpu.dot_dimension_numbers<[1], [0], [0], [1], [0, 0, 1, 1], [], []>} : vector<256x36xbf16>, vector<36x128xbf16>, vector<256x128xf32> -> vector<256x128xf32>
    %c0_i32 = arith.constant 0 : i32
    %3 = arith.cmpi eq, %arg0, %c0_i32 : i32
    %c0_i32_3 = arith.constant 0 : i32
    %4 = arith.cmpi eq, %arg1, %c0_i32_3 : i32
    %5 = arith.andi %3, %4 : i1
    %6 = arith.extui %5 : i1 to i32
    %c0_i32_4 = arith.constant 0 : i32
    %7 = arith.cmpi ne, %6, %c0_i32_4 : i32
    scf.if %7 {
      %cst_11 = arith.constant 0.000000e+00 : f32
      %19 = vector.broadcast %cst_11 : f32 to vector<2x128xf32>
      %c0_12 = arith.constant 0 : index
      %c0_13 = arith.constant 0 : index
      %20 = vector.load %arg7[%c0_12, %c0_13] : memref<2x128xf32, #tpu.memory_space<vmem>>, vector<2x128xf32>
      tpu.vector_store %arg7[%c0_12, %c0_13], %19 {strides = array<i32>} : memref<2x128xf32, #tpu.memory_space<vmem>>, vector<2x128xf32>,
    } else {
    }
    %c0_i32_5 = arith.constant 0 : i32
    %8 = arith.cmpi eq, %arg0, %c0_i32_5 : i32
    %9 = arith.extui %8 : i1 to i32
    %c0_i32_6 = arith.constant 0 : i32
    %10 = arith.cmpi ne, %9, %c0_i32_6 : i32
    scf.if %10 {
      %cst_11 = arith.constant dense<0.000000e+00> : vector<128xf32>
      %19 = vector.multi_reduction <add>, %2, %cst_11 [0] : vector<256x128xf32> to vector<128xf32>
      %20 = vector.shape_cast %19 : vector<128xf32> to vector<1x128xf32>
      %21 = arith.mulf %2, %2 : vector<256x128xf32>
      %cst_12 = arith.constant dense<0.000000e+00> : vector<128xf32>
      %22 = vector.multi_reduction <add>, %21, %cst_12 [0] : vector<256x128xf32> to vector<128xf32>
      %23 = vector.shape_cast %22 : vector<128xf32> to vector<1x128xf32>
      %c0_13 = arith.constant 0 : index
      %c0_14 = arith.constant 0 : index
      %24 = vector.load %arg7[%c0_13, %c0_14] : memref<2x128xf32, #tpu.memory_space<vmem>>, vector<2x128xf32>
      %25 = tpu.concatenate %20, %23 in 0 : vector<1x128xf32>, vector<1x128xf32> -> vector<2x128xf32>
      %26 = arith.addf %24, %25 : vector<2x128xf32>
      %c0_15 = arith.constant 0 : index
      %c0_16 = arith.constant 0 : index
      %27 = vector.load %arg7[%c0_15, %c0_16] : memref<2x128xf32, #tpu.memory_space<vmem>>, vector<2x128xf32>
      tpu.vector_store %arg7[%c0_15, %c0_16], %26 {strides = array<i32>} : memref<2x128xf32, #tpu.memory_space<vmem>>, vector<2x128xf32>,
    } else {
    }
    %c1_i32 = arith.constant 1 : i32
    %11 = arith.cmpi eq, %arg0, %c1_i32 : i32
    %c0_i32_7 = arith.constant 0 : i32
    %12 = arith.cmpi eq, %arg1, %c0_i32_7 : i32
    %13 = arith.andi %11, %12 : i1
    %14 = arith.extui %13 : i1 to i32
    %c0_i32_8 = arith.constant 0 : i32
    %15 = arith.cmpi ne, %14, %c0_i32_8 : i32
    scf.if %15 {
      %c0_11 = arith.constant 0 : index
      %c0_12 = arith.constant 0 : index
      %19 = vector.load %arg7[%c0_11, %c0_12] : memref<2x128xf32, #tpu.memory_space<vmem>>, vector<2x128xf32>
      %20 = vector.extract_strided_slice %19 {offsets = [0, 0], sizes = [1, 128], strides = [1, 1]} : vector<2x128xf32> to vector<1x128xf32>
      %cst_13 = arith.constant 0.001953125 : f32
      %21 = vector.broadcast %cst_13 : f32 to vector<1x128xf32>
      %22 = arith.mulf %20, %21 : vector<1x128xf32>
      %23 = vector.extract_strided_slice %19 {offsets = [1, 0], sizes = [1, 128], strides = [1, 1]} : vector<2x128xf32> to vector<1x128xf32>
      %cst_14 = arith.constant 0.001953125 : f32
      %24 = vector.broadcast %cst_14 : f32 to vector<1x128xf32>
      %25 = arith.mulf %23, %24 : vector<1x128xf32>
      %26 = arith.mulf %22, %22 : vector<1x128xf32>
      %27 = arith.subf %25, %26 : vector<1x128xf32>
      %cst_15 = arith.constant 0.000000e+00 : f32
      %28 = vector.broadcast %cst_15 : f32 to vector<1x128xf32>
      %29 = arith.maximumf %27, %28 : vector<1x128xf32>
      %cst_16 = arith.constant 9.99999974E-6 : f32
      %30 = vector.broadcast %cst_16 : f32 to vector<1x128xf32>
      %31 = arith.addf %29, %30 : vector<1x128xf32>
      %32 = math.rsqrt %31 : vector<1x128xf32>
      %c0_17 = arith.constant 0 : index
      %c0_18 = arith.constant 0 : index
      %33 = vector.load %arg4[%c0_17, %c0_18] : memref<1x128xf32, #tpu.memory_space<vmem>>, vector<1x128xf32>
      %34 = arith.mulf %33, %32 : vector<1x128xf32>
      %c0_19 = arith.constant 0 : index
      %c0_20 = arith.constant 0 : index
      %35 = vector.load %arg8[%c0_19, %c0_20] : memref<1x128xf32, #tpu.memory_space<vmem>>, vector<1x128xf32>
      tpu.vector_store %arg8[%c0_19, %c0_20], %34 {strides = array<i32>} : memref<1x128xf32, #tpu.memory_space<vmem>>, vector<1x128xf32>,
      %c0_21 = arith.constant 0 : index
      %c0_22 = arith.constant 0 : index
      %36 = vector.load %arg5[%c0_21, %c0_22] : memref<1x128xf32, #tpu.memory_space<vmem>>, vector<1x128xf32>
      %37 = arith.mulf %22, %34 : vector<1x128xf32>
      %38 = arith.subf %36, %37 : vector<1x128xf32>
      %c0_23 = arith.constant 0 : index
      %c0_24 = arith.constant 0 : index
      %39 = vector.load %arg9[%c0_23, %c0_24] : memref<1x128xf32, #tpu.memory_space<vmem>>, vector<1x128xf32>
      tpu.vector_store %arg9[%c0_23, %c0_24], %38 {strides = array<i32>} : memref<1x128xf32, #tpu.memory_space<vmem>>, vector<1x128xf32>,
    } else {
    }
    %c1_i32_9 = arith.constant 1 : i32
    %16 = arith.cmpi eq, %arg0, %c1_i32_9 : i32
    %17 = arith.extui %16 : i1 to i32
    %c0_i32_10 = arith.constant 0 : i32
    %18 = arith.cmpi ne, %17, %c0_i32_10 : i32
    scf.if %18 {
      %c0_11 = arith.constant 0 : index
      %c0_12 = arith.constant 0 : index
      %19 = vector.load %arg8[%c0_11, %c0_12] : memref<1x128xf32, #tpu.memory_space<vmem>>, vector<1x128xf32>
      %20 = vector.broadcast %19 : vector<1x128xf32> to vector<256x128xf32>
      %21 = arith.mulf %2, %20 : vector<256x128xf32>
      %c0_13 = arith.constant 0 : index
      %c0_14 = arith.constant 0 : index
      %22 = vector.load %arg9[%c0_13, %c0_14] : memref<1x128xf32, #tpu.memory_space<vmem>>, vector<1x128xf32>
      %23 = vector.broadcast %22 : vector<1x128xf32> to vector<256x128xf32>
      %24 = arith.addf %21, %23 : vector<256x128xf32>
      %cst_15 = arith.constant 0.000000e+00 : f32
      %25 = vector.broadcast %cst_15 : f32 to vector<256x128xf32>
      %26 = arith.maximumf %24, %25 : vector<256x128xf32>
      %27 = vector.extract_strided_slice %26 {offsets = [0, 0], sizes = [256, 8], strides = [1, 1]} : vector<256x128xf32> to vector<256x8xf32>
      %28 = arith.truncf %27 : vector<256x8xf32> to vector<256x8xbf16>
      %c0_16 = arith.constant 0 : index
      %c0_17 = arith.constant 0 : index
      %29 = vector.load %arg6[%c0_16, %c0_17] : memref<256x8xbf16, #tpu.memory_space<vmem>>, vector<256x8xbf16>
      tpu.vector_store %arg6[%c0_16, %c0_17], %28 {strides = array<i32>} : memref<256x8xbf16, #tpu.memory_space<vmem>>, vector<256x8xbf16>,
    } else {
    }
    return
  }
  func.func @transform_0(%arg0: i32, %arg1: i32) -> (i32, i32) {
    %c0_i32 = arith.constant 0 : i32
    %c0_i32_0 = arith.constant 0 : i32
    return %arg1, %c0_i32 : i32, i32
  }
  func.func @transform_1(%arg0: i32, %arg1: i32) -> (i32, i32) {
    %c0_i32 = arith.constant 0 : i32
    %c0_i32_0 = arith.constant 0 : i32
    %c0_i32_1 = arith.constant 0 : i32
    return %c0_i32, %c0_i32_0 : i32, i32
  }
  func.func @transform_2(%arg0: i32, %arg1: i32) -> (i32, i32) {
    %c0_i32 = arith.constant 0 : i32
    %c0_i32_0 = arith.constant 0 : i32
    %c0_i32_1 = arith.constant 0 : i32
    return %c0_i32, %c0_i32_0 : i32, i32
  }
  func.func @transform_3(%arg0: i32, %arg1: i32) -> (i32, i32) {
    %c0_i32 = arith.constant 0 : i32
    %c0_i32_0 = arith.constant 0 : i32
    %c0_i32_1 = arith.constant 0 : i32
    return %c0_i32, %c0_i32_0 : i32, i32
  }
  func.func @transform_4(%arg0: i32, %arg1: i32) -> (i32, i32) {
    %0 = arith.muli %arg1, %arg0 : i32
    %c0_i32 = arith.constant 0 : i32
    %c0_i32_0 = arith.constant 0 : i32
    return %0, %c0_i32 : i32, i32
  }
}

</mosaic_0001>

<llo_original>
// kernel: tpu_custom_call.1
$region0: #{tpu_custom_call.1}
  #allocation0 [shape = 'u32[]', space=smem, size = 0x4, offset = 0x4, fixed_abs, tag = 'smem constant byte address 0x4 - core index']
  #allocation1 [shape = 'u32[144,128]{1,0:T(1,128)}', space=vmem, size = 0x12000, scoped, tag = 'internal scratch']
  #allocation2 [shape = 'f32[2,128]{1,0:T(2,128)}', space=vmem, size = 0x400, scoped, tag = 'scratch operand']
  #allocation3 [shape = 'f32[1,128]{1,0:T(1,128)}', space=vmem, size = 0x200, scoped, tag = 'scratch operand']
  #allocation4 [shape = 'f32[1,128]{1,0:T(1,128)}', space=vmem, size = 0x200, scoped, tag = 'scratch operand']
  %s0 = inlined_call_operand.vmem [shape: bf16[512,36], index: 0, kind: input, shape index: {}]
  %s1 = inlined_call_operand.vmem [shape: bf16[36,128], index: 1, kind: input, shape index: {}]
  %s2 = inlined_call_operand.vmem [shape: f32[1,128], index: 2, kind: input, shape index: {}]
  %s3 = inlined_call_operand.vmem [shape: f32[1,128], index: 3, kind: input, shape index: {}]
  %s4 = inlined_call_operand.vmem [shape: bf16[512,8], index: 4, kind: output, shape index: {}]
  %s5 = sld [smem:[#allocation0]]
  $region65: #{tpu_custom_call.1} parent=0
    _
  %s7 = ssub.s32 1, %s5
  %s8 = scalar_select 0, %s7, %s5
  loop: start=0, step=1, limit=6
  $region2: #{tpu_custom_call.1} parent=0 // loop_pre_header
    _
  $region3: #{tpu_custom_call.1} parent=0 // loop_header
    %s10 = sphi 0, %s14
    %p11 = scmp.ge.s32.totalorder %s10, 6
    %s17 = sphi 0, %s29
    %s18 = sphi 0, %s25
    %s19 = sphi 0, %s17
    %s20 = sphi 0, %s18
    %s21 = sphi 0, %s19
    %s22 = sphi 0, %s20
    %s32 = sphi 0, %s34
    %s35 = sphi 0, %s32
    %s36 = sphi 0, %s35
    %s52 = sphi 0, %s36
    %s56 = sphi 0, %s56
    %s58 = sphi 0, %s56
    %s59 = sphi 0, %s58
    %s73 = sphi 0, %s59
    %s77 = sphi 0, %s77
    %s79 = sphi 0, %s77
    %s80 = sphi 0, %s79
    %s94 = sphi 0, %s80
    %s98 = sphi 0, %s98
    %s100 = sphi 0, %s98
    %s101 = sphi 0, %s100
    %s115 = sphi 0, %s101
    %s123 = sphi 0, %s125
    %s126 = sphi 0, %s123
    %s127 = sphi 0, %s126
    %s143 = sphi 0, %s127
  $region4: #{tpu_custom_call.1} parent=0 // loop_header_branch
    %13 = sbr.rel (%p11) target = $region8
  $region5: #{tpu_custom_call.1} parent=0 // loop_body
    %s15 = ssub.s32 %s10, 1
    %s16 = ssub.s32 %s10, 2
    %s23 = sadd.s32 1, %s18
    %p24 = scmp.ge.s32.totalorder %s23, 2
    %s25 = scalar_select %p24, 0, %s23
    %s26 = sadd.s32 1, %s17
    %s27 = scalar_select %p24, %s26, %s17
    %p28 = scmp.ge.s32.totalorder %s27, 2
    %s29 = scalar_select %p28, 0, %s27
    %s30 = ssub.s32 %s18, %s25
    %p31 = scmp.eq.s32.totalorder %s30, 0
    %s33 = sadd.s32 %s32, 1
    %s34 = scalar_select %p31, %s32, %s33
    %p37 = pneg %p31
    %p38 = scmp.eq.s32.totalorder %s10, 3
    %p39 = por %p37, %p38
    %p40 = scmp.ne.s32.totalorder %s32, %s35
    %p41 = scmp.eq.s32.totalorder %s10, 0
    %p42 = por %p40, %p41
    %p43 = scmp.ne.s32.totalorder %s32, %s35
    %p44 = scmp.eq.s32.totalorder %s15, 3
    %p45 = por %p43, %p44
    %p46 = scmp.ne.s32.totalorder %s35, %s36
    %p47 = scmp.eq.s32.totalorder %s15, 0
    %p48 = por %p46, %p47
    %p49 = scmp.ne.s32.totalorder %s35, %s36
    %p50 = scmp.eq.s32.totalorder %s16, 3
    %p51 = por %p49, %p50
    %p53 = scmp.ne.s32.totalorder %s36, %s52
    %p54 = scmp.eq.s32.totalorder %s16, 0
    %p55 = por %p53, %p54
    %s57 = sadd.s32 %s56, 1
    %p60 = scmp.eq.s32.totalorder %s10, 3
    %p61 = scmp.ne.s32.totalorder %s56, %s58
    %p62 = scmp.eq.s32.totalorder %s10, 0
    %p63 = por %p61, %p62
    %p64 = scmp.ne.s32.totalorder %s56, %s58
    %p65 = scmp.eq.s32.totalorder %s15, 3
    %p66 = por %p64, %p65
    %p67 = scmp.ne.s32.totalorder %s58, %s59
    %p68 = scmp.eq.s32.totalorder %s15, 0
    %p69 = por %p67, %p68
    %p70 = scmp.ne.s32.totalorder %s58, %s59
    %p71 = scmp.eq.s32.totalorder %s16, 3
    %p72 = por %p70, %p71
    %p74 = scmp.ne.s32.totalorder %s59, %s73
    %p75 = scmp.eq.s32.totalorder %s16, 0
    %p76 = por %p74, %p75
    %s78 = sadd.s32 %s77, 1
    %p81 = scmp.eq.s32.totalorder %s10, 3
    %p82 = scmp.ne.s32.totalorder %s77, %s79
    %p83 = scmp.eq.s32.totalorder %s10, 0
    %p84 = por %p82, %p83
    %p85 = scmp.ne.s32.totalorder %s77, %s79
    %p86 = scmp.eq.s32.totalorder %s15, 3
    %p87 = por %p85, %p86
    %p88 = scmp.ne.s32.totalorder %s79, %s80
    %p89 = scmp.eq.s32.totalorder %s15, 0
    %p90 = por %p88, %p89
    %p91 = scmp.ne.s32.totalorder %s79, %s80
    %p92 = scmp.eq.s32.totalorder %s16, 3
    %p93 = por %p91, %p92
    %p95 = scmp.ne.s32.totalorder %s80, %s94
    %p96 = scmp.eq.s32.totalorder %s16, 0
    %p97 = por %p95, %p96
    %s99 = sadd.s32 %s98, 1
    %p102 = scmp.eq.s32.totalorder %s10, 3
    %p103 = scmp.ne.s32.totalorder %s98, %s100
    %p104 = scmp.eq.s32.totalorder %s10, 0
    %p105 = por %p103, %p104
    %p106 = scmp.ne.s32.totalorder %s98, %s100
    %p107 = scmp.eq.s32.totalorder %s15, 3
    %p108 = por %p106, %p107
    %p109 = scmp.ne.s32.totalorder %s100, %s101
    %p110 = scmp.eq.s32.totalorder %s15, 0
    %p111 = por %p109, %p110
    %p112 = scmp.ne.s32.totalorder %s100, %s101
    %p113 = scmp.eq.s32.totalorder %s16, 3
    %p114 = por %p112, %p113
    %p116 = scmp.ne.s32.totalorder %s101, %s115
    %p117 = scmp.eq.s32.totalorder %s16, 0
    %p118 = por %p116, %p117
    %s119 = smul.u32 %s18, %s17
    %s120 = smul.u32 %s25, %s29
    %s121 = ssub.s32 %s119, %s120
    %p122 = scmp.eq.s32.totalorder %s121, 0
    %s124 = sadd.s32 %s123, 1
    %s125 = scalar_select %p122, %s123, %s124
    %p128 = pneg %p122
    %p129 = scmp.eq.s32.totalorder %s10, 3
    %p130 = por %p128, %p129
    %p131 = scmp.ne.s32.totalorder %s123, %s126
    %p132 = scmp.eq.s32.totalorder %s10, 0
    %p133 = por %p131, %p132
    %p134 = scmp.ne.s32.totalorder %s123, %s126
    %p135 = scmp.eq.s32.totalorder %s15, 3
    %p136 = por %p134, %p135
    %p137 = scmp.ne.s32.totalorder %s126, %s127
    %p138 = scmp.eq.s32.totalorder %s15, 0
    %p139 = por %p137, %p138
    %p140 = scmp.ne.s32.totalorder %s126, %s127
    %p141 = scmp.eq.s32.totalorder %s16, 3
    %p142 = por %p140, %p141
    %p144 = scmp.ne.s32.totalorder %s127, %s143
    %p145 = scmp.eq.s32.totalorder %s16, 0
    %p146 = por %p144, %p145
    %p147 = scmp.le.s32.totalorder 1, %s10
    %p148 = scmp.lt.s32.totalorder %s10, 5
    %p149 = pnand %p147, %p148
    %p150 = pneg %p149
    // Predicated region
    $region9: #{tpu_custom_call.1} parent=5 // pred_check
      _
    $region10: #{tpu_custom_call.1} parent=5 // pred_check_branch
      %152 = sbr.rel (%p149) target = $region12
    $region11: #{tpu_custom_call.1} parent=5 // pred_region
      %s153 = ssub.s32 %s10, 1
      // Predicated region
      $region13: #{tpu_custom_call.1} parent=11 // pred_check
        %p154 = pneg %p69
      $region14: #{tpu_custom_call.1} parent=11 // pred_check_branch
        %156 = sbr.rel (%p154) target = $region16
      $region15: #{tpu_custom_call.1} parent=11 // pred_region
        _
      $region16: #{tpu_custom_call.1} parent=11 // pred_fallthru
        _
      // Predicated region
      $region17: #{tpu_custom_call.1} parent=11 // pred_check
        %p157 = pneg %p90
      $region18: #{tpu_custom_call.1} parent=11 // pred_check_branch
        %159 = sbr.rel (%p157) target = $region20
      $region19: #{tpu_custom_call.1} parent=11 // pred_region
        _
      $region20: #{tpu_custom_call.1} parent=11 // pred_fallthru
        _
      // Predicated region
      $region21: #{tpu_custom_call.1} parent=11 // pred_check
        %p160 = pneg %p111
      $region22: #{tpu_custom_call.1} parent=11 // pred_check_branch
        %162 = sbr.rel (%p160) target = $region24
      $region23: #{tpu_custom_call.1} parent=11 // pred_region
        _
      $region24: #{tpu_custom_call.1} parent=11 // pred_fallthru
        _
    $region12: #{tpu_custom_call.1} parent=5 // pred_fallthru
      _
    %p163 = scmp.lt.s32.totalorder %s10, 4
    // Predicated region
    $region25: #{tpu_custom_call.1} parent=5 // pred_check
      %p164 = pneg %p163
    $region26: #{tpu_custom_call.1} parent=5 // pred_check_branch
      %166 = sbr.rel (%p164) target = $region28
    $region27: #{tpu_custom_call.1} parent=5 // pred_region
      // Predicated region
      $region29: #{tpu_custom_call.1} parent=27 // pred_check
        %p167 = pneg %p42
      $region30: #{tpu_custom_call.1} parent=27 // pred_check_branch
        %169 = sbr.rel (%p167) target = $region32
      $region31: #{tpu_custom_call.1} parent=27 // pred_region
        %s170 = smul.u32 32, %s18
        %p171 = scmp.lt.s32.totalorder %s170, 63
        %s172 = scalar_select %p171, %s170, 63
        %s173 = smul.addr %s172, 4
        %s174 = scalar_lea.vmem %s0, %s173
        %s175 = smul.u32 32, %s18
      $region32: #{tpu_custom_call.1} parent=27 // pred_fallthru
        _
    $region28: #{tpu_custom_call.1} parent=5 // pred_fallthru
      _
    %p176 = scmp.le.s32.totalorder 1, %s10
    %p177 = scmp.lt.s32.totalorder %s10, 5
    %p178 = pnand %p176, %p177
    %p179 = pneg %p178
    // Predicated region
    $region33: #{tpu_custom_call.1} parent=5 // pred_check
      _
    $region34: #{tpu_custom_call.1} parent=5 // pred_check_branch
      %181 = sbr.rel (%p178) target = $region36
    $region35: #{tpu_custom_call.1} parent=5 // pred_region
      %s182 = ssub.s32 %s10, 1
      %s183 = smul.u32 32, %s20
      %p184 = scmp.lt.s32.totalorder %s183, 63
      %s185 = scalar_select %p184, %s183, 63
      %s186 = smul.addr %s185, 4
      %s187 = scalar_lea.vmem %s0, %s186
      %p188 = pneg %p48
      %p189 = pneg %p45
      %p190 = pneg %p69
      %p191 = pneg %p66
      %p192 = pneg %p90
      %p193 = pneg %p87
      %p194 = pneg %p111
      %p195 = pneg %p108
      %p196 = pneg %p139
      %p197 = pneg %p136
      %s198 = smul.u32 %s20, %s19
      %s199 = smul.u32 32, %s198
      %p200 = scmp.lt.s32.totalorder %s199, 63
      %s201 = scalar_select %p200, %s199, 63
      %s202 = smul.addr %s201, 4
      %s203 = scalar_lea.vmem %s4, %s202
      %s204 = smul.u32 32, %s20
      %p205 = scmp.lt.s32.totalorder %s204, 63
      %s206 = scalar_select %p205, %s204, 63
      %s207 = smul.addr %s206, 4
      %s208 = scalar_lea.vmem %s0, %s207
      %s209 = smul.u32 32, %s20
      %s210 = smul.u32 %s20, %s19
      %s211 = smul.u32 32, %s210
      %p212 = scmp.lt.s32.totalorder %s211, 63
      %s213 = scalar_select %p212, %s211, 63
      %s214 = smul.addr %s213, 4
      %s215 = scalar_lea.vmem %s4, %s214
      %s216 = smul.u32 %s20, %s19
      %s217 = smul.u32 32, %s216
      %v219 = vld [vmem:[%s208] sm:$0xf]
      %v220 = vld [vmem:[%s208 + $0x4] sm:$0xf]
      %v221 = vld [vmem:[%s208 + $0x8] sm:$0xf]
      %v222 = vld [vmem:[%s208 + $0xc] sm:$0xf]
      %v223 = vld [vmem:[%s208 + $0x10] sm:$0xf]
      %v224 = vld [vmem:[%s208 + $0x14] sm:$0xf]
      %v225 = vld [vmem:[%s208 + $0x18] sm:$0xf]
      %v226 = vld [vmem:[%s208 + $0x1c] sm:$0xf]
      %v227 = vld [vmem:[%s208 + $0x20] sm:$0xf]
      %v228 = vld [vmem:[%s208 + $0x24] sm:$0xf]
      %v229 = vld [vmem:[%s208 + $0x28] sm:$0xf]
      %v230 = vld [vmem:[%s208 + $0x2c] sm:$0xf]
      %v231 = vld [vmem:[%s208 + $0x30] sm:$0xf]
      %v232 = vld [vmem:[%s208 + $0x34] sm:$0xf]
      %v233 = vld [vmem:[%s208 + $0x38] sm:$0xf]
      %v234 = vld [vmem:[%s208 + $0x3c] sm:$0xf]
      %v235 = vld [vmem:[%s208 + $0x40] sm:$0xf]
      %v236 = vld [vmem:[%s208 + $0x44] sm:$0xf]
      %v237 = vld [vmem:[%s208 + $0x48] sm:$0xf]
      %v238 = vld [vmem:[%s208 + $0x4c] sm:$0xf]
      %v239 = vld [vmem:[%s208 + $0x50] sm:$0xf]
      %v240 = vld [vmem:[%s208 + $0x54] sm:$0xf]
      %v241 = vld [vmem:[%s208 + $0x58] sm:$0xf]
      %v242 = vld [vmem:[%s208 + $0x5c] sm:$0xf]
      %v243 = vld [vmem:[%s208 + $0x60] sm:$0xf]
      %v244 = vld [vmem:[%s208 + $0x64] sm:$0xf]
      %v245 = vld [vmem:[%s208 + $0x68] sm:$0xf]
      %v246 = vld [vmem:[%s208 + $0x6c] sm:$0xf]
      %v247 = vld [vmem:[%s208 + $0x70] sm:$0xf]
      %v248 = vld [vmem:[%s208 + $0x74] sm:$0xf]
      %v249 = vld [vmem:[%s208 + $0x78] sm:$0xf]
      %v250 = vld [vmem:[%s208 + $0x7c] sm:$0xf]
      %v251 = vld [vmem:[%s1] sm:$0xf]
      %v252 = vld [vmem:[%s1 + $0x4] sm:$0xf]
      %v253 = vld [vmem:[%s1 + $0x8] sm:$0xf]
      %v254 = vld [vmem:[%s1 + $0xc] sm:$0xf]
      %v255 = vld [vmem:[%s1 + $0x10] sm:$0x3]
      %v288 = vunpack.c.l.b16 %v219
      %v289 = vunpack.c.l.b16 %v220
      %v290 = vunpack.c.l.b16 %v221
      %v291 = vunpack.c.l.b16 %v222
      %v292 = vunpack.c.l.b16 %v223
      %v293 = vunpack.c.l.b16 %v224
      %v294 = vunpack.c.l.b16 %v225
      %v295 = vunpack.c.l.b16 %v226
      %v296 = vunpack.c.l.b16 %v227
      %v297 = vunpack.c.l.b16 %v228
      %v298 = vunpack.c.l.b16 %v229
      %v299 = vunpack.c.l.b16 %v230
      %v300 = vunpack.c.l.b16 %v231
      %v301 = vunpack.c.l.b16 %v232
      %v302 = vunpack.c.l.b16 %v233
      %v303 = vunpack.c.l.b16 %v234
      %v304 = vunpack.c.l.b16 %v235
      %v305 = vunpack.c.l.b16 %v236
      %v306 = vunpack.c.l.b16 %v237
      %v307 = vunpack.c.l.b16 %v238
      %v308 = vunpack.c.l.b16 %v239
      %v309 = vunpack.c.l.b16 %v240
      %v310 = vunpack.c.l.b16 %v241
      %v311 = vunpack.c.l.b16 %v242
      %v312 = vunpack.c.l.b16 %v243
      %v313 = vunpack.c.l.b16 %v244
      %v314 = vunpack.c.l.b16 %v245
      %v315 = vunpack.c.l.b16 %v246
      %v316 = vunpack.c.l.b16 %v247
      %v317 = vunpack.c.l.b16 %v248
      %v318 = vunpack.c.l.b16 %v249
      %v319 = vunpack.c.l.b16 %v250
      %v320 = vpack.c.b16 %v289, %v288
      %v321 = vpack.c.b16 %v291, %v290
      %v322 = vpack.c.b16 %v293, %v292
      %v323 = vpack.c.b16 %v295, %v294
      %v324 = vpack.c.b16 %v297, %v296
      %v325 = vpack.c.b16 %v299, %v298
      %v326 = vpack.c.b16 %v301, %v300
      %v327 = vpack.c.b16 %v303, %v302
      %v328 = vpack.c.b16 %v305, %v304
      %v329 = vpack.c.b16 %v307, %v306
      %v330 = vpack.c.b16 %v309, %v308
      %v331 = vpack.c.b16 %v311, %v310
      %v332 = vpack.c.b16 %v313, %v312
      %v333 = vpack.c.b16 %v315, %v314
      %v334 = vpack.c.b16 %v317, %v316
      %v335 = vpack.c.b16 %v319, %v318
      %v341 = vunpack.c.l.b16 %v251
      %v342 = vunpack.c.l.b16 %v252
      %v343 = vunpack.c.l.b16 %v253
      %v344 = vunpack.c.l.b16 %v254
      %v345 = vunpack.c.l.b16 %v255
      %v346 = vpack.c.b16 %v342, %v341
      %v347 = vpack.c.b16 %v344, %v343
      %v348 = vpack.c.b16 %v345, %v345
      %vm351 = vcmask 293888
      %v353 = vsel %vm351, %v320, 0
      %v356 = vsel %vm351, %v321, 0
      %v359 = vsel %vm351, %v322, 0
      %v362 = vsel %vm351, %v323, 0
      %v365 = vsel %vm351, %v324, 0
      %v368 = vsel %vm351, %v325, 0
      %v371 = vsel %vm351, %v326, 0
      %v374 = vsel %vm351, %v327, 0
      %v377 = vsel %vm351, %v328, 0
      %v380 = vsel %vm351, %v329, 0
      %v383 = vsel %vm351, %v330, 0
      %v386 = vsel %vm351, %v331, 0
      %v389 = vsel %vm351, %v332, 0
      %v392 = vsel %vm351, %v333, 0
      %v395 = vsel %vm351, %v334, 0
      %v398 = vsel %vm351, %v335, 0
      %vm400 = vcmask 1041408
      %v402 = vsel %vm400, %v348, 0
      %404 = vmatprep.subr.bf16.mxu0 0
      %405 = vmatpush1.bf16.msra.mxu0 0
      %406 = vmatprep.subr.bf16.mxu0 0
      %407 = vmatpush1.bf16.msra.mxu0 0
      %408 = vmatprep.subr.bf16.mxu0 0
      %409 = vmatpush1.bf16.msra.mxu0 0
      %410 = vmatprep.subr.bf16.mxu0 0
      %411 = vmatpush1.bf16.msra.mxu0 0
      %412 = vmatprep.subr.bf16.mxu0 0
      %413 = vmatpush1.bf16.msra.mxu0 0
      %414 = vmatprep.subr.bf16.mxu0 0
      %415 = vmatpush1.bf16.msra.mxu0 %v402
      %416 = vmatprep.subr.bf16.mxu0 0
      %417 = vmatpush1.bf16.msra.mxu0 %v347
      %418 = vmatprep.subr.bf16.mxu0 0
      %419 = vmatpush1.bf16.msra.mxu0 %v346
      %420 = vmatprep.subr.bf16.mxu0 0
      %421 = vmatpush2.bf16.msra.mxu0 0
      %422 = vmatprep.subr.bf16.mxu0 0
      %423 = vmatpush2.bf16.msra.mxu0 0
      %424 = vmatprep.subr.bf16.mxu0 0
      %425 = vmatpush2.bf16.msra.mxu0 0
      %426 = vmatprep.subr.bf16.mxu0 0
      %427 = vmatpush2.bf16.msra.mxu0 0
      %428 = vmatprep.subr.bf16.mxu0 0
      %429 = vmatpush2.bf16.msra.mxu0 0
      %430 = vmatprep.subr.bf16.mxu0 0
      %431 = vmatpush2.bf16.msra.mxu0 0
      %432 = vmatprep.subr.bf16.mxu0 0
      %433 = vmatpush2.bf16.msra.mxu0 0
      %434 = vmatprep.subr.bf16.mxu0 0
      %435 = vmatpush2.bf16.msra.mxu0 0
      %436 = vmatprep.mubr.bf16.mxu0 0
      %437 = vmatmul.mubr.bf16.gmra.mxu0 %v353
      %v438 = vpop.f32.mrf.mxu0
      %v439 = vadd.f32 0.0, %v438
      %v440 = vpop.f32.mrf.mxu0
      %v441 = vpop.f32.mrf.mxu0
      %v442 = vadd.f32 0.0, %v441
      %v443 = vpop.f32.mrf.mxu0
      %444 = vmatprep.mubr.bf16.mxu0 0
      %445 = vmatmul.mubr.bf16.gmra.mxu0 %v356
      %v446 = vpop.f32.mrf.mxu0
      %v447 = vadd.f32 0.0, %v446
      %v448 = vpop.f32.mrf.mxu0
      %v449 = vpop.f32.mrf.mxu0
      %v450 = vadd.f32 0.0, %v449
      %v451 = vpop.f32.mrf.mxu0
      %452 = vmatprep.mubr.bf16.mxu0 0
      %453 = vmatmul.mubr.bf16.gmra.mxu0 %v359
      %v454 = vpop.f32.mrf.mxu0
      %v455 = vadd.f32 0.0, %v454
      %v456 = vpop.f32.mrf.mxu0
      %v457 = vpop.f32.mrf.mxu0
      %v458 = vadd.f32 0.0, %v457
      %v459 = vpop.f32.mrf.mxu0
      %460 = vmatprep.mubr.bf16.mxu0 0
      %461 = vmatmul.mubr.bf16.gmra.mxu0 %v362
      %v462 = vpop.f32.mrf.mxu0
      %v463 = vadd.f32 0.0, %v462
      %v464 = vpop.f32.mrf.mxu0
      %v465 = vpop.f32.mrf.mxu0
      %v466 = vadd.f32 0.0, %v465
      %v467 = vpop.f32.mrf.mxu0
      %468 = vmatprep.mubr.bf16.mxu0 0
      %469 = vmatmul.mubr.bf16.gmra.mxu0 %v365
      %v470 = vpop.f32.mrf.mxu0
      %v471 = vadd.f32 0.0, %v470
      %v472 = vpop.f32.mrf.mxu0
      %v473 = vpop.f32.mrf.mxu0
      %v474 = vadd.f32 0.0, %v473
      %v475 = vpop.f32.mrf.mxu0
      %476 = vmatprep.mubr.bf16.mxu0 0
      %477 = vmatmul.mubr.bf16.gmra.mxu0 %v368
      %v478 = vpop.f32.mrf.mxu0
      %v479 = vadd.f32 0.0, %v478
      %v480 = vpop.f32.mrf.mxu0
      %v481 = vpop.f32.mrf.mxu0
      %v482 = vadd.f32 0.0, %v481
      %v483 = vpop.f32.mrf.mxu0
      %484 = vmatprep.mubr.bf16.mxu0 0
      %485 = vmatmul.mubr.bf16.gmra.mxu0 %v371
      %v486 = vpop.f32.mrf.mxu0
      %v487 = vadd.f32 0.0, %v486
      %v488 = vpop.f32.mrf.mxu0
      %v489 = vpop.f32.mrf.mxu0
      %v490 = vadd.f32 0.0, %v489
      %v491 = vpop.f32.mrf.mxu0
      %492 = vmatprep.mubr.bf16.mxu0 0
      %493 = vmatmul.mubr.bf16.gmra.mxu0 %v374
      %v494 = vpop.f32.mrf.mxu0
      %v495 = vadd.f32 0.0, %v494
      %v496 = vpop.f32.mrf.mxu0
      %v497 = vpop.f32.mrf.mxu0
      %v498 = vadd.f32 0.0, %v497
      %v499 = vpop.f32.mrf.mxu0
      %500 = vmatprep.mubr.bf16.mxu0 0
      %501 = vmatmul.mubr.bf16.gmra.mxu0 %v377
      %v502 = vpop.f32.mrf.mxu0
      %v503 = vadd.f32 0.0, %v502
      %v504 = vpop.f32.mrf.mxu0
      %v505 = vpop.f32.mrf.mxu0
      %v506 = vadd.f32 0.0, %v505
      %v507 = vpop.f32.mrf.mxu0
      %508 = vmatprep.mubr.bf16.mxu0 0
      %509 = vmatmul.mubr.bf16.gmra.mxu0 %v380
      %v510 = vpop.f32.mrf.mxu0
      %v511 = vadd.f32 0.0, %v510
      %v512 = vpop.f32.mrf.mxu0
      %v513 = vpop.f32.mrf.mxu0
      %v514 = vadd.f32 0.0, %v513
      %v515 = vpop.f32.mrf.mxu0
      %516 = vmatprep.mubr.bf16.mxu0 0
      %517 = vmatmul.mubr.bf16.gmra.mxu0 %v383
      %v518 = vpop.f32.mrf.mxu0
      %v519 = vadd.f32 0.0, %v518
      %v520 = vpop.f32.mrf.mxu0
      %v521 = vpop.f32.mrf.mxu0
      %v522 = vadd.f32 0.0, %v521
      %v523 = vpop.f32.mrf.mxu0
      %524 = vmatprep.mubr.bf16.mxu0 0
      %525 = vmatmul.mubr.bf16.gmra.mxu0 %v386
      %v526 = vpop.f32.mrf.mxu0
      %v527 = vadd.f32 0.0, %v526
      %v528 = vpop.f32.mrf.mxu0
      %v529 = vpop.f32.mrf.mxu0
      %v530 = vadd.f32 0.0, %v529
      %v531 = vpop.f32.mrf.mxu0
      %532 = vmatprep.mubr.bf16.mxu0 0
      %533 = vmatmul.mubr.bf16.gmra.mxu0 %v389
      %v534 = vpop.f32.mrf.mxu0
      %v535 = vadd.f32 0.0, %v534
      %v536 = vpop.f32.mrf.mxu0
      %v537 = vpop.f32.mrf.mxu0
      %v538 = vadd.f32 0.0, %v537
      %v539 = vpop.f32.mrf.mxu0
      %540 = vmatprep.mubr.bf16.mxu0 0
      %541 = vmatmul.mubr.bf16.gmra.mxu0 %v392
      %v542 = vpop.f32.mrf.mxu0
      %v543 = vadd.f32 0.0, %v542
      %v544 = vpop.f32.mrf.mxu0
      %v545 = vpop.f32.mrf.mxu0
      %v546 = vadd.f32 0.0, %v545
      %v547 = vpop.f32.mrf.mxu0
      %548 = vmatprep.mubr.bf16.mxu0 0
      %549 = vmatmul.mubr.bf16.gmra.mxu0 %v395
      %v550 = vpop.f32.mrf.mxu0
      %v551 = vadd.f32 0.0, %v550
      %v552 = vpop.f32.mrf.mxu0
      %v553 = vpop.f32.mrf.mxu0
      %v554 = vadd.f32 0.0, %v553
      %v555 = vpop.f32.mrf.mxu0
      %556 = vmatprep.mubr.bf16.mxu0 0
      %557 = vmatmul.mubr.bf16.gmra.mxu0 %v398
      %v558 = vpop.f32.mrf.mxu0
      %v559 = vadd.f32 0.0, %v558
      %v560 = vpop.f32.mrf.mxu0
      %v561 = vpop.f32.mrf.mxu0
      %v562 = vadd.f32 0.0, %v561
      %v563 = vpop.f32.mrf.mxu0
      %564 = vdwg.mxu0
      %p565 = scmp.eq.s32.totalorder %s19, 0
      %p566 = scmp.eq.s32.totalorder %s20, 0
      %p567 = pnand %p565, %p566
      %p568 = pneg %p567
      // Predicated region
      $region37: #{tpu_custom_call.1} parent=35 // pred_check
        _
      $region38: #{tpu_custom_call.1} parent=35 // pred_check_branch
        %570 = sbr.rel (%p567) target = $region40
      $region39: #{tpu_custom_call.1} parent=35 // pred_region
        %571 = vst [vmem:[#allocation2] sm:$0x3] 0.0
      $region40: #{tpu_custom_call.1} parent=35 // pred_fallthru
        _
      // Predicated region
      $region41: #{tpu_custom_call.1} parent=35 // pred_check
        %p572 = pneg %p565
      $region42: #{tpu_custom_call.1} parent=35 // pred_check_branch
        %574 = sbr.rel (%p572) target = $region44
      $region43: #{tpu_custom_call.1} parent=35 // pred_region
        %v575 = vadd.f32 %v439, %v442
        %v576 = vadd.f32 %v575, %v447
        %v577 = vadd.f32 %v576, %v450
        %v578 = vadd.f32 %v577, %v455
        %v579 = vadd.f32 %v578, %v458
        %v580 = vadd.f32 %v579, %v463
        %v581 = vadd.f32 %v580, %v466
        %v582 = vadd.f32 %v581, %v471
        %v583 = vadd.f32 %v582, %v474
        %v584 = vadd.f32 %v583, %v479
        %v585 = vadd.f32 %v584, %v482
        %v586 = vadd.f32 %v585, %v487
        %v587 = vadd.f32 %v586, %v490
        %v588 = vadd.f32 %v587, %v495
        %v589 = vadd.f32 %v588, %v498
        %v590 = vadd.f32 %v589, %v503
        %v591 = vadd.f32 %v590, %v506
        %v592 = vadd.f32 %v591, %v511
        %v593 = vadd.f32 %v592, %v514
        %v594 = vadd.f32 %v593, %v519
        %v595 = vadd.f32 %v594, %v522
        %v596 = vadd.f32 %v595, %v527
        %v597 = vadd.f32 %v596, %v530
        %v598 = vadd.f32 %v597, %v535
        %v599 = vadd.f32 %v598, %v538
        %v600 = vadd.f32 %v599, %v543
        %v601 = vadd.f32 %v600, %v546
        %v602 = vadd.f32 %v601, %v551
        %v603 = vadd.f32 %v602, %v554
        %v604 = vadd.f32 %v603, %v559
        %v605 = vadd.f32 %v604, %v562
        %v606 = vrot.slane %v605, 4
        %v607 = vadd.f32 %v605, %v606
        %v608 = vrot.slane %v607, 2
        %v609 = vadd.f32 %v607, %v608
        %v610 = vrot.slane %v609, 1
        %v611 = vadd.f32 %v609, %v610
        %v612 = vmul.f32 %v439, %v439
        %v613 = vmul.f32 %v442, %v442
        %v614 = vmul.f32 %v447, %v447
        %v615 = vmul.f32 %v450, %v450
        %v616 = vmul.f32 %v455, %v455
        %v617 = vmul.f32 %v458, %v458
        %v618 = vmul.f32 %v463, %v463
        %v619 = vmul.f32 %v466, %v466
        %v620 = vmul.f32 %v471, %v471
        %v621 = vmul.f32 %v474, %v474
        %v622 = vmul.f32 %v479, %v479
        %v623 = vmul.f32 %v482, %v482
        %v624 = vmul.f32 %v487, %v487
        %v625 = vmul.f32 %v490, %v490
        %v626 = vmul.f32 %v495, %v495
        %v627 = vmul.f32 %v498, %v498
        %v628 = vmul.f32 %v503, %v503
        %v629 = vmul.f32 %v506, %v506
        %v630 = vmul.f32 %v511, %v511
        %v631 = vmul.f32 %v514, %v514
        %v632 = vmul.f32 %v519, %v519
        %v633 = vmul.f32 %v522, %v522
        %v634 = vmul.f32 %v527, %v527
        %v635 = vmul.f32 %v530, %v530
        %v636 = vmul.f32 %v535, %v535
        %v637 = vmul.f32 %v538, %v538
        %v638 = vmul.f32 %v543, %v543
        %v639 = vmul.f32 %v546, %v546
        %v640 = vmul.f32 %v551, %v551
        %v641 = vmul.f32 %v554, %v554
        %v642 = vmul.f32 %v559, %v559
        %v643 = vmul.f32 %v562, %v562
        %v644 = vadd.f32 %v612, %v613
        %v645 = vadd.f32 %v644, %v614
        %v646 = vadd.f32 %v645, %v615
        %v647 = vadd.f32 %v646, %v616
        %v648 = vadd.f32 %v647, %v617
        %v649 = vadd.f32 %v648, %v618
        %v650 = vadd.f32 %v649, %v619
        %v651 = vadd.f32 %v650, %v620
        %v652 = vadd.f32 %v651, %v621
        %v653 = vadd.f32 %v652, %v622
        %v654 = vadd.f32 %v653, %v623
        %v655 = vadd.f32 %v654, %v624
        %v656 = vadd.f32 %v655, %v625
        %v657 = vadd.f32 %v656, %v626
        %v658 = vadd.f32 %v657, %v627
        %v659 = vadd.f32 %v658, %v628
        %v660 = vadd.f32 %v659, %v629
        %v661 = vadd.f32 %v660, %v630
        %v662 = vadd.f32 %v661, %v631
        %v663 = vadd.f32 %v662, %v632
        %v664 = vadd.f32 %v663, %v633
        %v665 = vadd.f32 %v664, %v634
        %v666 = vadd.f32 %v665, %v635
        %v667 = vadd.f32 %v666, %v636
        %v668 = vadd.f32 %v667, %v637
        %v669 = vadd.f32 %v668, %v638
        %v670 = vadd.f32 %v669, %v639
        %v671 = vadd.f32 %v670, %v640
        %v672 = vadd.f32 %v671, %v641
        %v673 = vadd.f32 %v672, %v642
        %v674 = vadd.f32 %v673, %v643
        %v675 = vrot.slane %v674, 4
        %v676 = vadd.f32 %v674, %v675
        %v677 = vrot.slane %v676, 2
        %v678 = vadd.f32 %v676, %v677
        %v679 = vrot.slane %v678, 1
        %v680 = vadd.f32 %v678, %v679
        %v681 = vld [vmem:[#allocation2] sm:$0x3]
        %vm682 = vcmask 1040384
        %v683 = vsel %vm682, %v611, %v680
        %v684 = vadd.f32 %v681, %v683
        %685 = vst [vmem:[#allocation2] sm:$0x3] %v684
      $region44: #{tpu_custom_call.1} parent=35 // pred_fallthru
        _
      %p686 = scmp.eq.s32.totalorder %s19, 1
      %p687 = pnand %p686, %p566
      %p688 = pneg %p687
      // Predicated region
      $region45: #{tpu_custom_call.1} parent=35 // pred_check
        _
      $region46: #{tpu_custom_call.1} parent=35 // pred_check_branch
        %690 = sbr.rel (%p687) target = $region48
      $region47: #{tpu_custom_call.1} parent=35 // pred_region
        %v691 = vld [vmem:[#allocation2] sm:$0x3]
        %v692 = vmul.f32 %v691, 0.001953125
        %v693 = vmul.f32 %v692, %v692
        %v695 = vrot.slane %v693, 7
        %v697 = vsub.f32 %v692, %v695
        %v698 = vmax.f32 %v697, 0.0
        %v699 = vadd.f32 %v698, 1e-05
        %v700 = vrsqrt.pop %v699
        %v701 = vld [vmem:[%s2] sm:$0x1]
        %v704 = vunpack.c.l.s4 1966171168
        %v705 = vunpack.c.0.s8 %v704
        %v706 = vlaneseq
        %v707 = vshrl.u32 %v706, 7
        %v708 = vsub.s32 %v705, %v707
        %v709 = vrot.slane %v700, %v708
        %v710 = vcombine.high %v709, %v709
        %v712 = vunpack.c.l.s4 1966171168
        %v713 = vunpack.c.0.s8 %v712
        %v714 = vlaneseq
        %v715 = vshrl.u32 %v714, 7
        %v716 = vsub.s32 %v713, %v715
        %v717 = vrot.slane %v710, %v716
        %v719 = vmul.f32 %v701, %v717
        %720 = vst [vmem:[#allocation3] sm:$0x1] %v719
        %v721 = vld [vmem:[%s3] sm:$0x1]
        %v722 = vmul.f32 %v692, %v719
        %v723 = vsub.f32 %v721, %v722
        %724 = vst [vmem:[#allocation4] sm:$0x1] %v723
      $region48: #{tpu_custom_call.1} parent=35 // pred_fallthru
        _
      // Predicated region
      $region49: #{tpu_custom_call.1} parent=35 // pred_check
        %p725 = pneg %p686
      $region50: #{tpu_custom_call.1} parent=35 // pred_check_branch
        %727 = sbr.rel (%p725) target = $region52
      $region51: #{tpu_custom_call.1} parent=35 // pred_region
        %v728 = vld [vmem:[#allocation3] sm:$0x1]
        %v730 = vlaneseq
        %v731 = vshrl.u32 %v730, 7
        %v732 = vsub.s32 0, %v731
        %v733 = vrot.slane %v728, %v732
        %v735 = vmul.f32 %v439, %v733
        %v736 = vmul.f32 %v442, %v733
        %v737 = vmul.f32 %v447, %v733
        %v738 = vmul.f32 %v450, %v733
        %v739 = vmul.f32 %v455, %v733
        %v740 = vmul.f32 %v458, %v733
        %v741 = vmul.f32 %v463, %v733
        %v742 = vmul.f32 %v466, %v733
        %v743 = vmul.f32 %v471, %v733
        %v744 = vmul.f32 %v474, %v733
        %v745 = vmul.f32 %v479, %v733
        %v746 = vmul.f32 %v482, %v733
        %v747 = vmul.f32 %v487, %v733
        %v748 = vmul.f32 %v490, %v733
        %v749 = vmul.f32 %v495, %v733
        %v750 = vmul.f32 %v498, %v733
        %v751 = vmul.f32 %v503, %v733
        %v752 = vmul.f32 %v506, %v733
        %v753 = vmul.f32 %v511, %v733
        %v754 = vmul.f32 %v514, %v733
        %v755 = vmul.f32 %v519, %v733
        %v756 = vmul.f32 %v522, %v733
        %v757 = vmul.f32 %v527, %v733
        %v758 = vmul.f32 %v530, %v733
        %v759 = vmul.f32 %v535, %v733
        %v760 = vmul.f32 %v538, %v733
        %v761 = vmul.f32 %v543, %v733
        %v762 = vmul.f32 %v546, %v733
        %v763 = vmul.f32 %v551, %v733
        %v764 = vmul.f32 %v554, %v733
        %v765 = vmul.f32 %v559, %v733
        %v766 = vmul.f32 %v562, %v733
        %v767 = vld [vmem:[#allocation4] sm:$0x1]
        %v769 = vlaneseq
        %v770 = vshrl.u32 %v769, 7
        %v771 = vsub.s32 0, %v770
        %v772 = vrot.slane %v767, %v771
        %v774 = vadd.f32 %v735, %v772
        %v775 = vadd.f32 %v736, %v772
        %v776 = vadd.f32 %v737, %v772
        %v777 = vadd.f32 %v738, %v772
        %v778 = vadd.f32 %v739, %v772
        %v779 = vadd.f32 %v740, %v772
        %v780 = vadd.f32 %v741, %v772
        %v781 = vadd.f32 %v742, %v772
        %v782 = vadd.f32 %v743, %v772
        %v783 = vadd.f32 %v744, %v772
        %v784 = vadd.f32 %v745, %v772
        %v785 = vadd.f32 %v746, %v772
        %v786 = vadd.f32 %v747, %v772
        %v787 = vadd.f32 %v748, %v772
        %v788 = vadd.f32 %v749, %v772
        %v789 = vadd.f32 %v750, %v772
        %v790 = vadd.f32 %v751, %v772
        %v791 = vadd.f32 %v752, %v772
        %v792 = vadd.f32 %v753, %v772
        %v793 = vadd.f32 %v754, %v772
        %v794 = vadd.f32 %v755, %v772
        %v795 = vadd.f32 %v756, %v772
        %v796 = vadd.f32 %v757, %v772
        %v797 = vadd.f32 %v758, %v772
        %v798 = vadd.f32 %v759, %v772
        %v799 = vadd.f32 %v760, %v772
        %v800 = vadd.f32 %v761, %v772
        %v801 = vadd.f32 %v762, %v772
        %v802 = vadd.f32 %v763, %v772
        %v803 = vadd.f32 %v764, %v772
        %v804 = vadd.f32 %v765, %v772
        %v805 = vadd.f32 %v766, %v772
        %v806 = vmax.f32 %v774, 0.0
        %v807 = vmax.f32 %v775, 0.0
        %v808 = vmax.f32 %v776, 0.0
        %v809 = vmax.f32 %v777, 0.0
        %v810 = vmax.f32 %v778, 0.0
        %v811 = vmax.f32 %v779, 0.0
        %v812 = vmax.f32 %v780, 0.0
        %v813 = vmax.f32 %v781, 0.0
        %v814 = vmax.f32 %v782, 0.0
        %v815 = vmax.f32 %v783, 0.0
        %v816 = vmax.f32 %v784, 0.0
        %v817 = vmax.f32 %v785, 0.0
        %v818 = vmax.f32 %v786, 0.0
        %v819 = vmax.f32 %v787, 0.0
        %v820 = vmax.f32 %v788, 0.0
        %v821 = vmax.f32 %v789, 0.0
        %v822 = vmax.f32 %v790, 0.0
        %v823 = vmax.f32 %v791, 0.0
        %v824 = vmax.f32 %v792, 0.0
        %v825 = vmax.f32 %v793, 0.0
        %v826 = vmax.f32 %v794, 0.0
        %v827 = vmax.f32 %v795, 0.0
        %v828 = vmax.f32 %v796, 0.0
        %v829 = vmax.f32 %v797, 0.0
        %v830 = vmax.f32 %v798, 0.0
        %v831 = vmax.f32 %v799, 0.0
        %v832 = vmax.f32 %v800, 0.0
        %v833 = vmax.f32 %v801, 0.0
        %v834 = vmax.f32 %v802, 0.0
        %v835 = vmax.f32 %v803, 0.0
        %v836 = vmax.f32 %v804, 0.0
        %v837 = vmax.f32 %v805, 0.0
        %v838 = vpack.c.bf16 %v807, %v806
        %v839 = vpack.c.bf16 %v809, %v808
        %v840 = vpack.c.bf16 %v811, %v810
        %v841 = vpack.c.bf16 %v813, %v812
        %v842 = vpack.c.bf16 %v815, %v814
        %v843 = vpack.c.bf16 %v817, %v816
        %v844 = vpack.c.bf16 %v819, %v818
        %v845 = vpack.c.bf16 %v821, %v820
        %v846 = vpack.c.bf16 %v823, %v822
        %v847 = vpack.c.bf16 %v825, %v824
        %v848 = vpack.c.bf16 %v827, %v826
        %v849 = vpack.c.bf16 %v829, %v828
        %v850 = vpack.c.bf16 %v831, %v830
        %v851 = vpack.c.bf16 %v833, %v832
        %v852 = vpack.c.bf16 %v835, %v834
        %v853 = vpack.c.bf16 %v837, %v836
        %v870 = vunpack.c.l.b16 %v838
        %v871 = vunpack.c.h.b16 %v838
        %v872 = vunpack.c.l.b16 %v839
        %v873 = vunpack.c.h.b16 %v839
        %v874 = vunpack.c.l.b16 %v840
        %v875 = vunpack.c.h.b16 %v840
        %v876 = vunpack.c.l.b16 %v841
        %v877 = vunpack.c.h.b16 %v841
        %v878 = vunpack.c.l.b16 %v842
        %v879 = vunpack.c.h.b16 %v842
        %v880 = vunpack.c.l.b16 %v843
        %v881 = vunpack.c.h.b16 %v843
        %v882 = vunpack.c.l.b16 %v844
        %v883 = vunpack.c.h.b16 %v844
        %v884 = vunpack.c.l.b16 %v845
        %v885 = vunpack.c.h.b16 %v845
        %v886 = vunpack.c.l.b16 %v846
        %v887 = vunpack.c.h.b16 %v846
        %v888 = vunpack.c.l.b16 %v847
        %v889 = vunpack.c.h.b16 %v847
        %v890 = vunpack.c.l.b16 %v848
        %v891 = vunpack.c.h.b16 %v848
        %v892 = vunpack.c.l.b16 %v849
        %v893 = vunpack.c.h.b16 %v849
        %v894 = vunpack.c.l.b16 %v850
        %v895 = vunpack.c.h.b16 %v850
        %v896 = vunpack.c.l.b16 %v851
        %v897 = vunpack.c.h.b16 %v851
        %v898 = vunpack.c.l.b16 %v852
        %v899 = vunpack.c.h.b16 %v852
        %v900 = vunpack.c.l.b16 %v853
        %v901 = vunpack.c.h.b16 %v853
        %v902 = vpack.c.b16 %v870, %v870
        %v903 = vpack.c.b16 %v871, %v871
        %v904 = vpack.c.b16 %v872, %v872
        %v905 = vpack.c.b16 %v873, %v873
        %v906 = vpack.c.b16 %v874, %v874
        %v907 = vpack.c.b16 %v875, %v875
        %v908 = vpack.c.b16 %v876, %v876
        %v909 = vpack.c.b16 %v877, %v877
        %v910 = vpack.c.b16 %v878, %v878
        %v911 = vpack.c.b16 %v879, %v879
        %v912 = vpack.c.b16 %v880, %v880
        %v913 = vpack.c.b16 %v881, %v881
        %v914 = vpack.c.b16 %v882, %v882
        %v915 = vpack.c.b16 %v883, %v883
        %v916 = vpack.c.b16 %v884, %v884
        %v917 = vpack.c.b16 %v885, %v885
        %v918 = vpack.c.b16 %v886, %v886
        %v919 = vpack.c.b16 %v887, %v887
        %v920 = vpack.c.b16 %v888, %v888
        %v921 = vpack.c.b16 %v889, %v889
        %v922 = vpack.c.b16 %v890, %v890
        %v923 = vpack.c.b16 %v891, %v891
        %v924 = vpack.c.b16 %v892, %v892
        %v925 = vpack.c.b16 %v893, %v893
        %v926 = vpack.c.b16 %v894, %v894
        %v927 = vpack.c.b16 %v895, %v895
        %v928 = vpack.c.b16 %v896, %v896
        %v929 = vpack.c.b16 %v897, %v897
        %v930 = vpack.c.b16 %v898, %v898
        %v931 = vpack.c.b16 %v899, %v899
        %v932 = vpack.c.b16 %v900, %v900
        %v933 = vpack.c.b16 %v901, %v901
        %vm966 = vcmask 60416
        %967 = vst.msk [vmem:[%s215] sm:$0xf] %vm966, %v902
        %968 = vst.msk [vmem:[%s215 + $0x4] sm:$0xf] %vm966, %v903
        %969 = vst.msk [vmem:[%s215 + $0x8] sm:$0xf] %vm966, %v904
        %970 = vst.msk [vmem:[%s215 + $0xc] sm:$0xf] %vm966, %v905
        %971 = vst.msk [vmem:[%s215 + $0x10] sm:$0xf] %vm966, %v906
        %972 = vst.msk [vmem:[%s215 + $0x14] sm:$0xf] %vm966, %v907
        %973 = vst.msk [vmem:[%s215 + $0x18] sm:$0xf] %vm966, %v908
        %974 = vst.msk [vmem:[%s215 + $0x1c] sm:$0xf] %vm966, %v909
        %975 = vst.msk [vmem:[%s215 + $0x20] sm:$0xf] %vm966, %v910
        %976 = vst.msk [vmem:[%s215 + $0x24] sm:$0xf] %vm966, %v911
        %977 = vst.msk [vmem:[%s215 + $0x28] sm:$0xf] %vm966, %v912
        %978 = vst.msk [vmem:[%s215 + $0x2c] sm:$0xf] %vm966, %v913
        %979 = vst.msk [vmem:[%s215 + $0x30] sm:$0xf] %vm966, %v914
        %980 = vst.msk [vmem:[%s215 + $0x34] sm:$0xf] %vm966, %v915
        %981 = vst.msk [vmem:[%s215 + $0x38] sm:$0xf] %vm966, %v916
        %982 = vst.msk [vmem:[%s215 + $0x3c] sm:$0xf] %vm966, %v917
        %983 = vst.msk [vmem:[%s215 + $0x40] sm:$0xf] %vm966, %v918
        %984 = vst.msk [vmem:[%s215 + $0x44] sm:$0xf] %vm966, %v919
        %985 = vst.msk [vmem:[%s215 + $0x48] sm:$0xf] %vm966, %v920
        %986 = vst.msk [vmem:[%s215 + $0x4c] sm:$0xf] %vm966, %v921
        %987 = vst.msk [vmem:[%s215 + $0x50] sm:$0xf] %vm966, %v922
        %988 = vst.msk [vmem:[%s215 + $0x54] sm:$0xf] %vm966, %v923
        %989 = vst.msk [vmem:[%s215 + $0x58] sm:$0xf] %vm966, %v924
        %990 = vst.msk [vmem:[%s215 + $0x5c] sm:$0xf] %vm966, %v925
        %991 = vst.msk [vmem:[%s215 + $0x60] sm:$0xf] %vm966, %v926
        %992 = vst.msk [vmem:[%s215 + $0x64] sm:$0xf] %vm966, %v927
        %993 = vst.msk [vmem:[%s215 + $0x68] sm:$0xf] %vm966, %v928
        %994 = vst.msk [vmem:[%s215 + $0x6c] sm:$0xf] %vm966, %v929
        %995 = vst.msk [vmem:[%s215 + $0x70] sm:$0xf] %vm966, %v930
        %996 = vst.msk [vmem:[%s215 + $0x74] sm:$0xf] %vm966, %v931
        %997 = vst.msk [vmem:[%s215 + $0x78] sm:$0xf] %vm966, %v932
        %998 = vst.msk [vmem:[%s215 + $0x7c] sm:$0xf] %vm966, %v933
      $region52: #{tpu_custom_call.1} parent=35 // pred_fallthru
        _
      %s999 = smul.u32 %s20, %s19
      %s1000 = smul.u32 32, %s999
      %p1001 = scmp.lt.s32.totalorder %s1000, 63
      %s1002 = scalar_select %p1001, %s1000, 63
      %s1003 = smul.addr %s1002, 4
      %s1004 = scalar_lea.vmem %s4, %s1003
      // Predicated region
      $region53: #{tpu_custom_call.1} parent=35 // pred_check
        %p1005 = pneg %p136
      $region54: #{tpu_custom_call.1} parent=35 // pred_check_branch
        %1007 = sbr.rel (%p1005) target = $region56
      $region55: #{tpu_custom_call.1} parent=35 // pred_region
        %s1008 = smul.u32 %s20, %s19
        %s1009 = smul.u32 32, %s1008
      $region56: #{tpu_custom_call.1} parent=35 // pred_fallthru
        _
    $region36: #{tpu_custom_call.1} parent=5 // pred_fallthru
      _
    %p1010 = scmp.le.s32.totalorder 2, %s10
    // Predicated region
    $region57: #{tpu_custom_call.1} parent=5 // pred_check
      %p1011 = pneg %p1010
    $region58: #{tpu_custom_call.1} parent=5 // pred_check_branch
      %1013 = sbr.rel (%p1011) target = $region60
    $region59: #{tpu_custom_call.1} parent=5 // pred_region
      %s1014 = ssub.s32 %s10, 2
      // Predicated region
      $region61: #{tpu_custom_call.1} parent=59 // pred_check
        %p1015 = pneg %p142
      $region62: #{tpu_custom_call.1} parent=59 // pred_check_branch
        %1017 = sbr.rel (%p1015) target = $region64
      $region63: #{tpu_custom_call.1} parent=59 // pred_region
        %s1018 = smul.u32 %s22, %s21
        %s1019 = smul.u32 32, %s1018
        %p1020 = scmp.lt.s32.totalorder %s1019, 63
        %s1021 = scalar_select %p1020, %s1019, 63
        %s1022 = smul.addr %s1021, 4
        %s1023 = scalar_lea.vmem %s4, %s1022
      $region64: #{tpu_custom_call.1} parent=59 // pred_fallthru
        _
    $region60: #{tpu_custom_call.1} parent=5 // pred_fallthru
      _
  $region6: #{tpu_custom_call.1} parent=0 // loop_footer
    %s14 = sadd.s32 1, %s10
  $region7: #{tpu_custom_call.1} parent=0 // loop_footer_branch
    %9 = sbr.rel target = $region3
  $region8: #{tpu_custom_call.1} parent=0 // loop_exit
    _

</llo_original>
